<compile_context>
chip_gen: v7x
topology: tpu7x:2x2x1
jax: 0.10.0
libtpu: 0.0.40
codegen_flags: <defaults>
</compile_context>

<pallas_src>
import functools

import jax
import jax.numpy as jnp
from jax.experimental import pallas as pl
from jax.experimental.pallas import tpu as pltpu


def _cdiv(a, b):
    return -(-a // b)


def _round_up(a, b):
    return _cdiv(a, b) * b


def _coskld_partial_kernel(s_ref, t_ref, ss_ref, tt_ref, st_ref, *,
                           use_sqrt, d_tile, n_k, d_total, need_mask):
    """Accumulate per-row partial sums over D tiles.

    s_ref, t_ref : (b_tile, d_tile) input tiles (storage dtype).
    ss/tt/st_ref : (1, b_tile, 1) f32 accumulators, resident across the
                   reduction (last) grid axis.
    """
    k = pl.program_id(2)  # D-reduction step (last, "arbitrary" axis)

    @pl.when(k == 0)
    def _init():
        ss_ref[...] = jnp.zeros_like(ss_ref)
        tt_ref[...] = jnp.zeros_like(tt_ref)
        st_ref[...] = jnp.zeros_like(st_ref)

    s = s_ref[...].astype(jnp.float32)
    t = t_ref[...].astype(jnp.float32)

    if need_mask:
        # Zero out columns past the true feature dim (ragged last tile and
        # fully-phantom tiles whose DMA index was clamped in the index_map).
        p = pl.program_id(1)
        col0 = (p * n_k + k) * d_tile
        cols = jax.lax.broadcasted_iota(jnp.int32, s.shape, 1) + col0
        valid = cols < d_total
        s = jnp.where(valid, s, 0.0)
        t = jnp.where(valid, t, 0.0)

    if use_sqrt:
        # signed square-root preprocessing (matches torch.sign * sqrt(|x|+eps));
        # maps masked zeros to exactly zero (sign(0) == 0).
        s = jnp.sign(s) * jnp.sqrt(jnp.abs(s) + 1e-12)
        t = jnp.sign(t) * jnp.sqrt(jnp.abs(t) + 1e-12)

    ss_ref[0] += jnp.sum(s * s, axis=1, keepdims=True)  # (b_tile, 1)
    tt_ref[0] += jnp.sum(t * t, axis=1, keepdims=True)
    st_ref[0] += jnp.sum(s * t, axis=1, keepdims=True)


def coskld_loss(s_feat, t_feat, class_weight=None, target=None, *,
                size_average=True, sqrt=False,
                d_tile=2048, b_tile=128, n_parallel=2):
    """Pallas implementation of CosKLD.forward.

    s_feat, t_feat : (B, C, H, W) (or anything that flattens like .view(B, -1)).
    class_weight   : optional (num_classes,); target: optional (B,) int.
    Returns a scalar f32 loss.
    """
    B = s_feat.shape[0]
    s_flat = s_feat.reshape(B, -1)
    t_flat = t_feat.reshape(B, -1)
    D = s_flat.shape[1]

    # ---- D tiling: reduction axis, optionally split across a parallel axis.
    if D <= d_tile:
        d_tile = D                      # single full-extent block
        n_d_blocks = 1
    else:
        d_tile = _round_up(min(d_tile, D), 128)
        n_d_blocks = _cdiv(D, d_tile)

    n_parallel = max(1, min(n_parallel, n_d_blocks))
    n_k = _cdiv(n_d_blocks, n_parallel)
    has_phantom = n_parallel * n_k > n_d_blocks
    need_mask = has_phantom or (D % d_tile != 0)
    last_d_block = n_d_blocks - 1

    # ---- B tiling (parallel axis).  Ragged edge handled by Pallas boundary
    #      blocks (partial writeback); no host-side padding copy.
    if B <= b_tile:
        b_tile = B                      # full-dim block
        n_b = 1
    else:
        b_tile = _round_up(b_tile, 8)
        n_b = _cdiv(B, b_tile)

    if has_phantom:
        def in_map(b, p, k):
            # Clamp phantom D-blocks to a valid block (no OOB DMA); the
            # kernel masks their contribution to exactly zero.
            return (b, jnp.minimum(p * n_k + k, last_d_block))
    else:
        def in_map(b, p, k):
            return (b, p * n_k + k)

    out_map = lambda b, p, k: (p, b, 0)

    kernel = functools.partial(
        _coskld_partial_kernel,
        use_sqrt=sqrt, d_tile=d_tile, n_k=n_k, d_total=D, need_mask=need_mask)

    part_shape = jax.ShapeDtypeStruct((n_parallel, B, 1), jnp.float32)

    ss_p, tt_p, st_p = pl.pallas_call(
        kernel,
        out_shape=(part_shape, part_shape, part_shape),
        grid_spec=pltpu.PrefetchScalarGridSpec(
            num_scalar_prefetch=0,
            grid=(n_b, n_parallel, n_k),
            in_specs=[
                pl.BlockSpec((b_tile, d_tile), in_map),
                pl.BlockSpec((b_tile, d_tile), in_map),
            ],
            out_specs=(
                pl.BlockSpec((1, b_tile, 1), out_map),
                pl.BlockSpec((1, b_tile, 1), out_map),
                pl.BlockSpec((1, b_tile, 1), out_map),
            ),
        ),
        compiler_params=pltpu.CompilerParams(
            dimension_semantics=("parallel", "parallel", "arbitrary")),
    )(s_flat, t_flat)

    # ---- Finalize (tiny, O(B) plain JAX): combine partial chunks, normalize,
    #      apply per-sample class weight, reduce, size_average.
    ss = jnp.sum(ss_p, axis=0)[:, 0]
    tt = jnp.sum(tt_p, axis=0)[:, 0]
    st = jnp.sum(st_p, axis=0)[:, 0]

    # F.normalize(dim=1): x / max(||x||, eps) with eps = 1e-12.
    ns = jnp.maximum(jnp.sqrt(ss), 1e-12)
    nt = jnp.maximum(jnp.sqrt(tt), 1e-12)
    per_row = ss / (ns * ns) + tt / (nt * nt) - 2.0 * st / (ns * nt)

    if class_weight is not None and target is not None:
        per_row = per_row * class_weight[target].astype(jnp.float32)

    loss = jnp.sum(per_row)
    if size_average:
        loss = loss / jnp.float32(B)   # matches the module: divide by batch only
    return loss


def coskld_ref(s_feat, t_feat, class_weight=None, target=None,
               *, size_average=True, sqrt=False):
    """Pure-JAX reference mirroring the PyTorch module."""
    B = s_feat.shape[0]
    s = s_feat.reshape(B, -1).astype(jnp.float32)
    t = t_feat.reshape(B, -1).astype(jnp.float32)
    if sqrt:
        s = jnp.sign(s) * jnp.sqrt(jnp.abs(s) + 1e-12)
        t = jnp.sign(t) * jnp.sqrt(jnp.abs(t) + 1e-12)
    s = s / jnp.maximum(jnp.linalg.norm(s, axis=1, keepdims=True), 1e-12)
    t = t / jnp.maximum(jnp.linalg.norm(t, axis=1, keepdims=True), 1e-12)
    mse = (s - t) ** 2
    if class_weight is not None and target is not None:
        mse = mse * class_weight[target][:, None]
    loss = jnp.sum(mse)
    if size_average:
        loss = loss / B
    return loss


if __name__ == "__main__":
    key = jax.random.PRNGKey(0)
    k1, k2, k3, k4, k5, k6 = jax.random.split(key, 6)

    B, C, H, W = 2, 4, 16, 16
    num_classes = 8

    s_feat = jax.random.normal(k1, (B, C, H, W), dtype=jnp.float32)
    t_feat = jax.random.normal(k2, (B, C, H, W), dtype=jnp.float32)
    class_weight = jnp.linspace(0.5, 1.5, num_classes, dtype=jnp.float32)
    target = jax.random.randint(k3, (B,), 0, num_classes)

    # Case 1: defaults (no class weight, size_average=True).
    out1 = coskld_loss(s_feat, t_feat)
    ref1 = coskld_ref(s_feat, t_feat)

    # Case 2: class weights + signed-sqrt preprocessing.
    out2 = coskld_loss(s_feat, t_feat, class_weight, target, sqrt=True)
    ref2 = coskld_ref(s_feat, t_feat, class_weight, target, sqrt=True)

    # Case 3: multi-step pipelined grid (parallel D split + reduction steps).
    out3 = coskld_loss(s_feat, t_feat, class_weight, target,
                       d_tile=256, n_parallel=2)
    ref3 = coskld_ref(s_feat, t_feat, class_weight, target)

    # Case 4: ragged D tiling (D=1024 not divisible by 384) -> in-kernel
    # column masking + clamped phantom block.
    out4 = coskld_loss(s_feat, t_feat, class_weight, target,
                       d_tile=384, n_parallel=2)
    ref4 = ref3

    # Case 5: ragged batch edge (B=10 not divisible by b_tile=8).
    B5 = 10
    s5 = jax.random.normal(k4, (B5, 4, 8, 8), dtype=jnp.float32)
    t5 = jax.random.normal(k5, (B5, 4, 8, 8), dtype=jnp.float32)
    target5 = jax.random.randint(k6, (B5,), 0, num_classes)
    out5 = coskld_loss(s5, t5, class_weight, target5, b_tile=8)
    ref5 = coskld_ref(s5, t5, class_weight, target5)

    jax.block_until_ready((out1, out2, out3, out4, out5))

    def _close(a, b, tol=1e-4):
        return abs(float(a) - float(b)) <= tol * max(1.0, abs(float(b)))

    assert _close(out1, ref1), (out1, ref1)
    assert _close(out2, ref2), (out2, ref2)
    assert _close(out3, ref3), (out3, ref3)
    assert _close(out4, ref4), (out4, ref4)
    assert _close(out5, ref5), (out5, ref5)

    print("KERNEL_OK")
</pallas_src>

<mosaic_0001>
module attributes {stable_mosaic.version = 11 : i64} {
  func.func @_coskld_partial_kernel(%arg0: i32, %arg1: i32, %arg2: i32, %arg3: memref<2x1024xf32, #tpu.memory_space<vmem>>, %arg4: memref<2x1024xf32, #tpu.memory_space<vmem>>, %arg5: memref<1x2x1xf32, #tpu.memory_space<vmem>>, %arg6: memref<1x2x1xf32, #tpu.memory_space<vmem>>, %arg7: memref<1x2x1xf32, #tpu.memory_space<vmem>>) attributes {dimension_semantics = [#tpu.dimension_semantics<parallel>, #tpu.dimension_semantics<parallel>, #tpu.dimension_semantics<arbitrary>], iteration_bounds = array<i64: 1, 1, 1>, scalar_prefetch = 0 : i64, scratch_operands = 0 : i64, tpu.core_type = #tpu.core_type<tc>, window_params = [{transform_indices = @transform_0, window_bounds = array<i64: 2, 1024>}, {transform_indices = @transform_1, window_bounds = array<i64: 2, 1024>}, {transform_indices = @transform_2, window_bounds = array<i64: 1, 2, 1>}, {transform_indices = @transform_3, window_bounds = array<i64: 1, 2, 1>}, {transform_indices = @transform_4, window_bounds = array<i64: 1, 2, 1>}]} {
    %c0_i32 = arith.constant 0 : i32
    %0 = arith.cmpi eq, %arg2, %c0_i32 : i32
    %1 = arith.extui %0 : i1 to i32
    %c0_i32_0 = arith.constant 0 : i32
    %2 = arith.cmpi ne, %1, %c0_i32_0 : i32
    scf.if %2 {
      %cst_24 = arith.constant 0.000000e+00 : f32
      %32 = vector.broadcast %cst_24 : f32 to vector<1x2x1xf32>
      %c0_25 = arith.constant 0 : index
      %c0_26 = arith.constant 0 : index
      %c0_27 = arith.constant 0 : index
      %33 = vector.load %arg5[%c0_25, %c0_26, %c0_27] : memref<1x2x1xf32, #tpu.memory_space<vmem>>, vector<1x2x1xf32>
      tpu.vector_store %arg5[%c0_25, %c0_26, %c0_27], %32 {strides = array<i32>} : memref<1x2x1xf32, #tpu.memory_space<vmem>>, vector<1x2x1xf32>,
      %cst_28 = arith.constant 0.000000e+00 : f32
      %34 = vector.broadcast %cst_28 : f32 to vector<1x2x1xf32>
      %c0_29 = arith.constant 0 : index
      %c0_30 = arith.constant 0 : index
      %c0_31 = arith.constant 0 : index
      %35 = vector.load %arg6[%c0_29, %c0_30, %c0_31] : memref<1x2x1xf32, #tpu.memory_space<vmem>>, vector<1x2x1xf32>
      tpu.vector_store %arg6[%c0_29, %c0_30, %c0_31], %34 {strides = array<i32>} : memref<1x2x1xf32, #tpu.memory_space<vmem>>, vector<1x2x1xf32>,
      %cst_32 = arith.constant 0.000000e+00 : f32
      %36 = vector.broadcast %cst_32 : f32 to vector<1x2x1xf32>
      %c0_33 = arith.constant 0 : index
      %c0_34 = arith.constant 0 : index
      %c0_35 = arith.constant 0 : index
      %37 = vector.load %arg7[%c0_33, %c0_34, %c0_35] : memref<1x2x1xf32, #tpu.memory_space<vmem>>, vector<1x2x1xf32>
      tpu.vector_store %arg7[%c0_33, %c0_34, %c0_35], %36 {strides = array<i32>} : memref<1x2x1xf32, #tpu.memory_space<vmem>>, vector<1x2x1xf32>,
    } else {
    }
    %c0 = arith.constant 0 : index
    %c0_1 = arith.constant 0 : index
    %3 = vector.load %arg3[%c0, %c0_1] : memref<2x1024xf32, #tpu.memory_space<vmem>>, vector<2x1024xf32>
    %c0_2 = arith.constant 0 : index
    %c0_3 = arith.constant 0 : index
    %4 = vector.load %arg4[%c0_2, %c0_3] : memref<2x1024xf32, #tpu.memory_space<vmem>>, vector<2x1024xf32>
    %c0_4 = arith.constant 0 : index
    %c0_5 = arith.constant 0 : index
    %c0_6 = arith.constant 0 : index
    %5 = vector.load %arg5[%c0_4, %c0_5, %c0_6] : memref<1x2x1xf32, #tpu.memory_space<vmem>>, vector<1x2x1xf32>
    %6 = vector.shape_cast %5 : vector<1x2x1xf32> to vector<2x1xf32>
    %7 = arith.mulf %3, %3 : vector<2x1024xf32>
    %cst = arith.constant dense<0.000000e+00> : vector<2xf32>
    %8 = vector.multi_reduction <add>, %7, %cst [1] : vector<2x1024xf32> to vector<2xf32>
    %9 = vector.shape_cast %8 : vector<2xf32> to vector<2x1xf32>
    %10 = arith.addf %6, %9 : vector<2x1xf32>
    %c0_7 = arith.constant 0 : index
    %c0_8 = arith.constant 0 : index
    %c0_9 = arith.constant 0 : index
    %11 = vector.load %arg5[%c0_7, %c0_8, %c0_9] : memref<1x2x1xf32, #tpu.memory_space<vmem>>, vector<1x2x1xf32>
    %12 = vector.shape_cast %11 : vector<1x2x1xf32> to vector<2x1xf32>
    %13 = vector.shape_cast %10 : vector<2x1xf32> to vector<1x2x1xf32>
    tpu.vector_store %arg5[%c0_7, %c0_8, %c0_9], %13 {strides = array<i32>} : memref<1x2x1xf32, #tpu.memory_space<vmem>>, vector<1x2x1xf32>,
    %c0_10 = arith.constant 0 : index
    %c0_11 = arith.constant 0 : index
    %c0_12 = arith.constant 0 : index
    %14 = vector.load %arg6[%c0_10, %c0_11, %c0_12] : memref<1x2x1xf32, #tpu.memory_space<vmem>>, vector<1x2x1xf32>
    %15 = vector.shape_cast %14 : vector<1x2x1xf32> to vector<2x1xf32>
    %16 = arith.mulf %4, %4 : vector<2x1024xf32>
    %cst_13 = arith.constant dense<0.000000e+00> : vector<2xf32>
    %17 = vector.multi_reduction <add>, %16, %cst_13 [1] : vector<2x1024xf32> to vector<2xf32>
    %18 = vector.shape_cast %17 : vector<2xf32> to vector<2x1xf32>
    %19 = arith.addf %15, %18 : vector<2x1xf32>
    %c0_14 = arith.constant 0 : index
    %c0_15 = arith.constant 0 : index
    %c0_16 = arith.constant 0 : index
    %20 = vector.load %arg6[%c0_14, %c0_15, %c0_16] : memref<1x2x1xf32, #tpu.memory_space<vmem>>, vector<1x2x1xf32>
    %21 = vector.shape_cast %20 : vector<1x2x1xf32> to vector<2x1xf32>
    %22 = vector.shape_cast %19 : vector<2x1xf32> to vector<1x2x1xf32>
    tpu.vector_store %arg6[%c0_14, %c0_15, %c0_16], %22 {strides = array<i32>} : memref<1x2x1xf32, #tpu.memory_space<vmem>>, vector<1x2x1xf32>,
    %c0_17 = arith.constant 0 : index
    %c0_18 = arith.constant 0 : index
    %c0_19 = arith.constant 0 : index
    %23 = vector.load %arg7[%c0_17, %c0_18, %c0_19] : memref<1x2x1xf32, #tpu.memory_space<vmem>>, vector<1x2x1xf32>
    %24 = vector.shape_cast %23 : vector<1x2x1xf32> to vector<2x1xf32>
    %25 = arith.mulf %3, %4 : vector<2x1024xf32>
    %cst_20 = arith.constant dense<0.000000e+00> : vector<2xf32>
    %26 = vector.multi_reduction <add>, %25, %cst_20 [1] : vector<2x1024xf32> to vector<2xf32>
    %27 = vector.shape_cast %26 : vector<2xf32> to vector<2x1xf32>
    %28 = arith.addf %24, %27 : vector<2x1xf32>
    %c0_21 = arith.constant 0 : index
    %c0_22 = arith.constant 0 : index
    %c0_23 = arith.constant 0 : index
    %29 = vector.load %arg7[%c0_21, %c0_22, %c0_23] : memref<1x2x1xf32, #tpu.memory_space<vmem>>, vector<1x2x1xf32>
    %30 = vector.shape_cast %29 : vector<1x2x1xf32> to vector<2x1xf32>
    %31 = vector.shape_cast %28 : vector<2x1xf32> to vector<1x2x1xf32>
    tpu.vector_store %arg7[%c0_21, %c0_22, %c0_23], %31 {strides = array<i32>} : memref<1x2x1xf32, #tpu.memory_space<vmem>>, vector<1x2x1xf32>,
    return
  }
  func.func @transform_0(%arg0: i32, %arg1: i32, %arg2: i32) -> (i32, i32) {
    %c1_i32 = arith.constant 1 : i32
    %0 = arith.muli %arg1, %c1_i32 : i32
    %1 = arith.addi %0, %arg2 : i32
    %c0_i32 = arith.constant 0 : i32
    return %arg0, %1 : i32, i32
  }
  func.func @transform_1(%arg0: i32, %arg1: i32, %arg2: i32) -> (i32, i32) {
    %c1_i32 = arith.constant 1 : i32
    %0 = arith.muli %arg1, %c1_i32 : i32
    %1 = arith.addi %0, %arg2 : i32
    %c0_i32 = arith.constant 0 : i32
    return %arg0, %1 : i32, i32
  }
  func.func @transform_2(%arg0: i32, %arg1: i32, %arg2: i32) -> (i32, i32, i32) {
    %c0_i32 = arith.constant 0 : i32
    %c0_i32_0 = arith.constant 0 : i32
    return %arg1, %arg0, %c0_i32 : i32, i32, i32
  }
  func.func @transform_3(%arg0: i32, %arg1: i32, %arg2: i32) -> (i32, i32, i32) {
    %c0_i32 = arith.constant 0 : i32
    %c0_i32_0 = arith.constant 0 : i32
    return %arg1, %arg0, %c0_i32 : i32, i32, i32
  }
  func.func @transform_4(%arg0: i32, %arg1: i32, %arg2: i32) -> (i32, i32, i32) {
    %c0_i32 = arith.constant 0 : i32
    %c0_i32_0 = arith.constant 0 : i32
    return %arg1, %arg0, %c0_i32 : i32, i32, i32
  }
}

</mosaic_0001>

<llo_original>
// kernel: tpu_custom_call.1
$region0: #{tpu_custom_call.1}
  #allocation0 [shape = 'u32[]', space=smem, size = 0x4, offset = 0x4, fixed_abs, tag = 'smem constant byte address 0x4 - core index']
  #allocation1 [shape = 'u32[144,128]{1,0:T(1,128)}', space=vmem, size = 0x12000, scoped, tag = 'internal scratch']
  %s0 = inlined_call_operand.hbm [shape: f32[2,1024], index: 0, kind: input, shape index: {}]
  %s1 = inlined_call_operand.hbm [shape: f32[2,1024], index: 1, kind: input, shape index: {}]
  %s2 = inlined_call_operand.vmem [shape: f32[1,2,1], index: 2, kind: output, shape index: {0}]
  %s3 = inlined_call_operand.vmem [shape: f32[1,2,1], index: 3, kind: output, shape index: {1}]
  %s4 = inlined_call_operand.vmem [shape: f32[1,2,1], index: 4, kind: output, shape index: {2}]
  %5 = xla_tuple %s2, %s3, %s4
  %s6 = sld [smem:[#allocation0]]
  $region46: #{tpu_custom_call.1} parent=0
    _
  %s8 = ssub.s32 1, %s6
  %s9 = scalar_select 0, %s8, %s6
  $region1: #{tpu_custom_call.1} parent=0
    #allocation2 [shape = 'u8[8192]{0}', space=vmem, size = 0x2000, scoped, tag = 'input window, operand 0, single buffered']
    #allocation3 [shape = 's32[1]{0}', space=sflag, size = 0x4, scoped, tag = 'scoped memory for tpu_custom_call.1']
    #allocation4 [shape = 'u8[8192]{0}', space=vmem, size = 0x2000, scoped, tag = 'input window, operand 1, single buffered']
    #allocation5 [shape = 's32[1]{0}', space=sflag, size = 0x4, scoped, tag = 'scoped memory for tpu_custom_call.1']
    %10 = vsyncpa [#allocation3], 0
    %11 = vsyncpa [#allocation5], 0
    // Predicated region
    $region2: #{tpu_custom_call.1} parent=1 // pred_check
      _
    $region3: #{tpu_custom_call.1} parent=1 // pred_check_branch
      %13 = sbr.rel (0) target = $region5
    $region4: #{tpu_custom_call.1} parent=1 // pred_region
      %s14 = sadd.s32 0, 0
      %s15 = smul.u32 8, %s14
      %s17 = ssub.s32 256, 256
      %18 = vsyncadd [#allocation3], %s17
      %s19 = smul.addr %s15, 32
      %s20 = scalar_lea.hbm %s0, %s19
      %s22 = sshll.u32 [#allocation2], 4
      %s23 = int_to_ptr.vmem [resolvable:$true] %s22
      %25 = dma.hbm_to_vmem [thread:$0]  %s20, 256, %s23, [#allocation3]
    $region5: #{tpu_custom_call.1} parent=1 // pred_fallthru
      _
    // Predicated region
    $region6: #{tpu_custom_call.1} parent=1 // pred_check
      _
    $region7: #{tpu_custom_call.1} parent=1 // pred_check_branch
      %27 = sbr.rel (0) target = $region9
    $region8: #{tpu_custom_call.1} parent=1 // pred_region
      %s28 = sadd.s32 0, 0
      %s29 = smul.u32 8, %s28
      %s31 = ssub.s32 256, 256
      %32 = vsyncadd [#allocation5], %s31
      %s33 = smul.addr %s29, 32
      %s34 = scalar_lea.hbm %s1, %s33
      %s36 = sshll.u32 [#allocation4], 4
      %s37 = int_to_ptr.vmem [resolvable:$true] %s36
      %39 = dma.hbm_to_vmem [thread:$0]  %s34, 256, %s37, [#allocation5]
    $region9: #{tpu_custom_call.1} parent=1 // pred_fallthru
      _
    // Predicated region
    $region10: #{tpu_custom_call.1} parent=1 // pred_check
      _
    $region11: #{tpu_custom_call.1} parent=1 // pred_check_branch
      %41 = sbr.rel (0) target = $region13
    $region12: #{tpu_custom_call.1} parent=1 // pred_region
      %42 = dma.done [#allocation3], 256
    $region13: #{tpu_custom_call.1} parent=1 // pred_fallthru
      _
    // Predicated region
    $region14: #{tpu_custom_call.1} parent=1 // pred_check
      _
    $region15: #{tpu_custom_call.1} parent=1 // pred_check_branch
      %44 = sbr.rel (0) target = $region17
    $region16: #{tpu_custom_call.1} parent=1 // pred_region
      %45 = dma.done [#allocation5], 256
    $region17: #{tpu_custom_call.1} parent=1 // pred_fallthru
      _
    %s46 = sadd.s32 0, 0
    %s47 = smul.u32 8, %s46
    %s48 = sadd.s32 0, 0
    %s49 = smul.u32 8, %s48
    %p50 = scmp.eq.s32.totalorder 0, 0
    // Predicated region
    $region18: #{tpu_custom_call.1} parent=1 // pred_check
      %p51 = pneg %p50
    $region19: #{tpu_custom_call.1} parent=1 // pred_check_branch
      %53 = sbr.rel (%p51) target = $region21
    $region20: #{tpu_custom_call.1} parent=1 // pred_region
      %vm54 = vcmask 1024
      %55 = vst.msk [vmem:[%s2] sm:$0x3] %vm54, 0.0
      %56 = vst.msk [vmem:[%s3] sm:$0x3] %vm54, 0.0
      %57 = vst.msk [vmem:[%s4] sm:$0x3] %vm54, 0.0
    $region21: #{tpu_custom_call.1} parent=1 // pred_fallthru
      _
    %v58 = vld [vmem:[#allocation2] sm:$0xff]
    %v59 = vld [vmem:[#allocation2 + $0x8] sm:$0xff]
    %v60 = vld [vmem:[#allocation4] sm:$0xff]
    %v61 = vld [vmem:[#allocation4 + $0x8] sm:$0xff]
    %v62 = vld [vmem:[%s2] sm:$0x3]
    %v63 = vmul.f32 %v58, %v58
    %v64 = vmul.f32 %v59, %v59
    %v67 = vcombine.high %v63, %v63
    %v69 = vunpack.c.l.s4 1983009808
    %v70 = vunpack.c.0.s8 %v69
    %v71 = vlaneseq
    %v72 = vshrl.u32 %v71, 7
    %v73 = vsub.s32 %v70, %v72
    %v74 = vrot.slane %v63, %v73
    %v76 = vunpack.c.l.s4 1983009808
    %v77 = vunpack.c.0.s8 %v76
    %v78 = vlaneseq
    %v79 = vshrl.u32 %v78, 7
    %v80 = vsub.s32 %v77, %v79
    %v81 = vrot.slane %v67, %v80
    %v82 = vcombine.high %v74, %v74
    %v83 = vcombine.high %v81, %v81
    %v84 = vcombine.high %v64, %v64
    %v86 = vunpack.c.l.s4 1983009808
    %v87 = vunpack.c.0.s8 %v86
    %v88 = vlaneseq
    %v89 = vshrl.u32 %v88, 7
    %v90 = vsub.s32 %v87, %v89
    %v91 = vrot.slane %v64, %v90
    %v93 = vunpack.c.l.s4 1983009808
    %v94 = vunpack.c.0.s8 %v93
    %v95 = vlaneseq
    %v96 = vshrl.u32 %v95, 7
    %v97 = vsub.s32 %v94, %v96
    %v98 = vrot.slane %v84, %v97
    %v99 = vcombine.high %v91, %v91
    %v100 = vcombine.high %v98, %v98
    %vm109 = vcmask 1041408
    %v110 = vsel %vm109, %v74, 0.0
    %v111 = vsel %vm109, %v82, 0.0
    %v112 = vadd.f32 %v110, %v111
    %v113 = vsel %vm109, %v81, 0.0
    %v114 = vadd.f32 %v112, %v113
    %v115 = vsel %vm109, %v83, 0.0
    %v116 = vadd.f32 %v114, %v115
    %v117 = vsel %vm109, %v91, 0.0
    %v118 = vadd.f32 %v116, %v117
    %v119 = vsel %vm109, %v99, 0.0
    %v120 = vadd.f32 %v118, %v119
    %v121 = vsel %vm109, %v98, 0.0
    %v122 = vadd.f32 %v120, %v121
    %v123 = vsel %vm109, %v100, 0.0
    %v124 = vadd.f32 %v122, %v123
    %125 = vadd.xlane.f32.xlu0 %v124
    %v126 = vpop.xlane.xlu0 %125
    %v127 = vadd.f32 %v62, %v126
    %vm128 = vcmask 1024
    %129 = vst.msk [vmem:[%s2] sm:$0x3] %vm128, %v127
    %v130 = vld [vmem:[%s3] sm:$0x3]
    %v131 = vmul.f32 %v60, %v60
    %v132 = vmul.f32 %v61, %v61
    %v135 = vcombine.high %v131, %v131
    %v137 = vunpack.c.l.s4 1983009808
    %v138 = vunpack.c.0.s8 %v137
    %v139 = vlaneseq
    %v140 = vshrl.u32 %v139, 7
    %v141 = vsub.s32 %v138, %v140
    %v142 = vrot.slane %v131, %v141
    %v144 = vunpack.c.l.s4 1983009808
    %v145 = vunpack.c.0.s8 %v144
    %v146 = vlaneseq
    %v147 = vshrl.u32 %v146, 7
    %v148 = vsub.s32 %v145, %v147
    %v149 = vrot.slane %v135, %v148
    %v150 = vcombine.high %v142, %v142
    %v151 = vcombine.high %v149, %v149
    %v152 = vcombine.high %v132, %v132
    %v154 = vunpack.c.l.s4 1983009808
    %v155 = vunpack.c.0.s8 %v154
    %v156 = vlaneseq
    %v157 = vshrl.u32 %v156, 7
    %v158 = vsub.s32 %v155, %v157
    %v159 = vrot.slane %v132, %v158
    %v161 = vunpack.c.l.s4 1983009808
    %v162 = vunpack.c.0.s8 %v161
    %v163 = vlaneseq
    %v164 = vshrl.u32 %v163, 7
    %v165 = vsub.s32 %v162, %v164
    %v166 = vrot.slane %v152, %v165
    %v167 = vcombine.high %v159, %v159
    %v168 = vcombine.high %v166, %v166
    %v177 = vsel %vm109, %v142, 0.0
    %v178 = vsel %vm109, %v150, 0.0
    %v179 = vadd.f32 %v177, %v178
    %v180 = vsel %vm109, %v149, 0.0
    %v181 = vadd.f32 %v179, %v180
    %v182 = vsel %vm109, %v151, 0.0
    %v183 = vadd.f32 %v181, %v182
    %v184 = vsel %vm109, %v159, 0.0
    %v185 = vadd.f32 %v183, %v184
    %v186 = vsel %vm109, %v167, 0.0
    %v187 = vadd.f32 %v185, %v186
    %v188 = vsel %vm109, %v166, 0.0
    %v189 = vadd.f32 %v187, %v188
    %v190 = vsel %vm109, %v168, 0.0
    %v191 = vadd.f32 %v189, %v190
    %192 = vadd.xlane.f32.xlu0 %v191
    %v193 = vpop.xlane.xlu0 %192
    %v194 = vadd.f32 %v130, %v193
    %195 = vst.msk [vmem:[%s3] sm:$0x3] %vm128, %v194
    %v196 = vld [vmem:[%s4] sm:$0x3]
    %v197 = vmul.f32 %v58, %v60
    %v198 = vmul.f32 %v59, %v61
    %v201 = vcombine.high %v197, %v197
    %v203 = vunpack.c.l.s4 1983009808
    %v204 = vunpack.c.0.s8 %v203
    %v205 = vlaneseq
    %v206 = vshrl.u32 %v205, 7
    %v207 = vsub.s32 %v204, %v206
    %v208 = vrot.slane %v197, %v207
    %v210 = vunpack.c.l.s4 1983009808
    %v211 = vunpack.c.0.s8 %v210
    %v212 = vlaneseq
    %v213 = vshrl.u32 %v212, 7
    %v214 = vsub.s32 %v211, %v213
    %v215 = vrot.slane %v201, %v214
    %v216 = vcombine.high %v208, %v208
    %v217 = vcombine.high %v215, %v215
    %v218 = vcombine.high %v198, %v198
    %v220 = vunpack.c.l.s4 1983009808
    %v221 = vunpack.c.0.s8 %v220
    %v222 = vlaneseq
    %v223 = vshrl.u32 %v222, 7
    %v224 = vsub.s32 %v221, %v223
    %v225 = vrot.slane %v198, %v224
    %v227 = vunpack.c.l.s4 1983009808
    %v228 = vunpack.c.0.s8 %v227
    %v229 = vlaneseq
    %v230 = vshrl.u32 %v229, 7
    %v231 = vsub.s32 %v228, %v230
    %v232 = vrot.slane %v218, %v231
    %v233 = vcombine.high %v225, %v225
    %v234 = vcombine.high %v232, %v232
    %v243 = vsel %vm109, %v208, 0.0
    %v244 = vsel %vm109, %v216, 0.0
    %v245 = vadd.f32 %v243, %v244
    %v246 = vsel %vm109, %v215, 0.0
    %v247 = vadd.f32 %v245, %v246
    %v248 = vsel %vm109, %v217, 0.0
    %v249 = vadd.f32 %v247, %v248
    %v250 = vsel %vm109, %v225, 0.0
    %v251 = vadd.f32 %v249, %v250
    %v252 = vsel %vm109, %v233, 0.0
    %v253 = vadd.f32 %v251, %v252
    %v254 = vsel %vm109, %v232, 0.0
    %v255 = vadd.f32 %v253, %v254
    %v256 = vsel %vm109, %v234, 0.0
    %v257 = vadd.f32 %v255, %v256
    %258 = vadd.xlane.f32.xlu0 %v257
    %v259 = vpop.xlane.xlu0 %258
    %v260 = vadd.f32 %v196, %v259
    %261 = vst.msk [vmem:[%s4] sm:$0x3] %vm128, %v260
    // Predicated region
    $region22: #{tpu_custom_call.1} parent=1 // pred_check
      _
    $region23: #{tpu_custom_call.1} parent=1 // pred_check_branch
      %263 = sbr.rel (0) target = $region25
    $region24: #{tpu_custom_call.1} parent=1 // pred_region
      _
    $region25: #{tpu_custom_call.1} parent=1 // pred_fallthru
      _
    // Predicated region
    $region26: #{tpu_custom_call.1} parent=1 // pred_check
      _
    $region27: #{tpu_custom_call.1} parent=1 // pred_check_branch
      %265 = sbr.rel (0) target = $region29
    $region28: #{tpu_custom_call.1} parent=1 // pred_region
      _
    $region29: #{tpu_custom_call.1} parent=1 // pred_fallthru
      _
    // Predicated region
    $region30: #{tpu_custom_call.1} parent=1 // pred_check
      _
    $region31: #{tpu_custom_call.1} parent=1 // pred_check_branch
      %267 = sbr.rel (0) target = $region33
    $region32: #{tpu_custom_call.1} parent=1 // pred_region
      _
    $region33: #{tpu_custom_call.1} parent=1 // pred_fallthru
      _
    // Predicated region
    $region34: #{tpu_custom_call.1} parent=1 // pred_check
      _
    $region35: #{tpu_custom_call.1} parent=1 // pred_check_branch
      %269 = sbr.rel (0) target = $region37
    $region36: #{tpu_custom_call.1} parent=1 // pred_region
      _
    $region37: #{tpu_custom_call.1} parent=1 // pred_fallthru
      _
    // Predicated region
    $region38: #{tpu_custom_call.1} parent=1 // pred_check
      _
    $region39: #{tpu_custom_call.1} parent=1 // pred_check_branch
      %271 = sbr.rel (0) target = $region41
    $region40: #{tpu_custom_call.1} parent=1 // pred_region
      _
    $region41: #{tpu_custom_call.1} parent=1 // pred_fallthru
      _
    // Predicated region
    $region42: #{tpu_custom_call.1} parent=1 // pred_check
      _
    $region43: #{tpu_custom_call.1} parent=1 // pred_check_branch
      %273 = sbr.rel (0) target = $region45
    $region44: #{tpu_custom_call.1} parent=1 // pred_region
      _
    $region45: #{tpu_custom_call.1} parent=1 // pred_fallthru
      _
    %274 = vsyncpa [#allocation3], 1
    %275 = vsyncpa [#allocation5], 1

</llo_original>
